<compile_context>
chip_gen: v6e
topology: v6e:2x2x1
jax: 0.10.0
libtpu: 0.0.40
codegen_flags: <defaults>
</compile_context>

<pallas_src>
import functools

import numpy as np
import jax
import jax.numpy as jnp
from jax.experimental import pallas as pl
from jax.experimental.pallas import tpu as pltpu


def _fused_flows_kernel(x_ref, w1_ref, b1_ref, wst_ref, bst_ref,
                        zs_ref, ld_ref, x_scr, ld_scr, *, f_chunk):
    """One grid step == F_CHUNK affine coupling flows (parity baked into weights).

    Per flow i of the chunk:
        h   = leaky_relu(x @ W1_full[i] + b1[i])     # W1_full zero on passthrough rows
        st  = h @ [Ws|Wt]_full[i] + [bs|bt][i]       # fused conditioner heads
        s, t = st[:, :d], st[:, d:]                  # zero on the passthrough half
        x   = x * exp(s) + t                         # passthrough half: x*1 + 0 = x
        log_det += sum(s, axis=1)
    """
    c = pl.program_id(0)
    d = x_scr.shape[1]

    @pl.when(c == 0)
    def _():
        x_scr[...] = x_ref[...]
        ld_scr[...] = jnp.zeros_like(ld_scr)

    x = x_scr[...]                                                   # (m, d)
    ld = ld_scr[...]                                                 # (m, 1)

    # Static unrolled loop over the flows of this chunk (static ref indices).
    for i in range(f_chunk):
        h = jnp.dot(x, w1_ref[i], preferred_element_type=jnp.float32) + b1_ref[i]
        h = jnp.where(h > 0, h, 0.01 * h)                            # LeakyReLU(0.01)
        st = jnp.dot(h, wst_ref[i], preferred_element_type=jnp.float32) + bst_ref[i]
        s = st[:, :d]                                                # (m, d)
        t = st[:, d:]                                                # (m, d)
        x = x * jnp.exp(s) + t                                       # (m, d)
        zs_ref[i] = x                                                # history slab
        ld = ld + jnp.sum(s, axis=1, keepdims=True)

    x_scr[...] = x                            # carry to next chunk (VMEM-resident)
    ld_scr[...] = ld

    @pl.when(c == pl.num_programs(0) - 1)
    def _():
        ld_ref[...] = ld                      # single final store of log_det


def _stack_flow_params(flows, d, hidden):
    """Stack per-flow params with parity baked in (zero-padded to full width)."""
    half = d // 2
    n = len(flows)
    w1_f = np.zeros((n, d, hidden), np.float32)
    b1_f = np.zeros((n, 1, hidden), np.float32)
    wst_f = np.zeros((n, hidden, 2 * d), np.float32)
    bst_f = np.zeros((n, 1, 2 * d), np.float32)
    for i, ((w1, b1, ws, bs, wt, bt), parity) in enumerate(flows):
        w1, b1 = np.asarray(w1), np.asarray(b1)
        ws, bs = np.asarray(ws), np.asarray(bs)
        wt, bt = np.asarray(wt), np.asarray(bt)
        cond_start = half if parity else 0       # conditioning half (passthrough)
        trans_start = 0 if parity else half      # transformed half
        w1_f[i, cond_start:cond_start + half, :] = w1
        b1_f[i, 0, :] = b1[0]
        wst_f[i, :, trans_start:trans_start + half] = ws
        bst_f[i, 0, trans_start:trans_start + half] = bs[0]
        wst_f[i, :, d + trans_start:d + trans_start + half] = wt
        bst_f[i, 0, d + trans_start:d + trans_start + half] = bt[0]
    return (jnp.asarray(w1_f), jnp.asarray(b1_f),
            jnp.asarray(wst_f), jnp.asarray(bst_f))


def _pick_flow_chunk(n_flows, max_chunk=8):
    """Largest divisor of n_flows that is <= max_chunk."""
    for c in range(min(max_chunk, n_flows), 0, -1):
        if n_flows % c == 0:
            return c
    return 1


def normalizing_flow_forward(x, flows):
    """Mirror of NormalizingFlow.forward: returns (zs list, log_det of shape (m,))."""
    m, d = x.shape
    n_flows = len(flows)
    hidden = flows[0][0][0].shape[1]
    f_chunk = _pick_flow_chunk(n_flows)
    n_chunks = n_flows // f_chunk

    w1, b1, wst, bst = _stack_flow_params(flows, d, hidden)

    cost = pl.CostEstimate(
        flops=n_flows * (2 * m * d * hidden + 2 * m * hidden * 2 * d + 6 * m * d),
        transcendentals=n_flows * m * d,
        bytes_accessed=4 * (m * d + w1.size + b1.size + wst.size + bst.size
                            + n_flows * m * d + m),
    )

    # Explicit VMEM budget from actual block sizes (double-buffered weight and
    # zs blocks, resident x / scratch / log_det), with headroom for padding.
    blk_bytes = 4 * (
        2 * f_chunk * (d * hidden + hidden + hidden * 2 * d + 2 * d)   # weights
        + 2 * f_chunk * m * d                                          # zs block
        + 2 * m * d                                                    # x input
        + m * d                                                        # x carry
        + 2 * m * 128                                                  # ld out + scr (padded)
    )
    vmem_limit = int(min(max(blk_bytes * 2 + (1 << 20), 4 << 20), 128 << 20))

    grid_spec = pltpu.PrefetchScalarGridSpec(
        num_scalar_prefetch=0,
        grid=(n_chunks,),
        in_specs=[
            pl.BlockSpec((m, d), lambda c: (0, 0)),                       # x (resident)
            pl.BlockSpec((f_chunk, d, hidden), lambda c: (c, 0, 0)),      # W1_full chunk
            pl.BlockSpec((f_chunk, 1, hidden), lambda c: (c, 0, 0)),      # b1 chunk
            pl.BlockSpec((f_chunk, hidden, 2 * d), lambda c: (c, 0, 0)),  # [Ws|Wt] chunk
            pl.BlockSpec((f_chunk, 1, 2 * d), lambda c: (c, 0, 0)),       # [bs|bt] chunk
        ],
        out_specs=(
            pl.BlockSpec((f_chunk, m, d), lambda c: (c, 0, 0)),           # zs history
            pl.BlockSpec((m, 1), lambda c: (0, 0)),                       # log_det
        ),
        scratch_shapes=[
            pltpu.VMEM((m, d), jnp.float32),    # running x carry
            pltpu.VMEM((m, 1), jnp.float32),    # log_det accumulator
        ],
    )

    zs_stacked, ld = pl.pallas_call(
        functools.partial(_fused_flows_kernel, f_chunk=f_chunk),
        grid_spec=grid_spec,
        out_shape=(jax.ShapeDtypeStruct((n_flows, m, d), jnp.float32),
                   jax.ShapeDtypeStruct((m, 1), jnp.float32)),
        compiler_params=pltpu.CompilerParams(
            dimension_semantics=("arbitrary",),      # flow-chunk axis carries state
            vmem_limit_bytes=vmem_limit),
        cost_estimate=cost,
    )(x, w1, b1, wst, bst)

    zs = [x] + [zs_stacked[i] for i in range(n_flows)]
    return zs, ld[:, 0]


# ----------------------------- pure-JAX reference -----------------------------
def _reference_forward(x, flows):
    m, d = x.shape
    half = d // 2
    log_det = jnp.zeros((m,), jnp.float32)
    zs = [x]
    for (w1, b1, ws, bs, wt, bt), parity in flows:
        if parity:
            x0, x1 = x[:, half:], x[:, :half]
        else:
            x0, x1 = x[:, :half], x[:, half:]
        h = x0 @ w1 + b1
        h = jnp.where(h > 0, h, 0.01 * h)
        s = h @ ws + bs
        t = h @ wt + bt
        z1 = x1 * jnp.exp(s) + t
        x = jnp.concatenate([z1, x0], axis=1) if parity else jnp.concatenate([x0, z1], axis=1)
        log_det = log_det + jnp.sum(s, axis=1)
        zs.append(x)
    return zs, log_det


def _init_flows(key, n_flows, dim, hidden):
    half = dim // 2
    flows = []
    for i in range(n_flows):
        key, k1, k2, k3 = jax.random.split(key, 4)
        w1 = 0.1 * jax.random.normal(k1, (half, hidden), jnp.float32)
        b1 = jnp.zeros((1, hidden), jnp.float32)
        ws = 0.1 * jax.random.normal(k2, (hidden, half), jnp.float32)
        bs = jnp.zeros((1, half), jnp.float32)
        wt = 0.1 * jax.random.normal(k3, (hidden, half), jnp.float32)
        bt = jnp.zeros((1, half), jnp.float32)
        flows.append(((w1, b1, ws, bs, wt, bt), i % 2))
    return flows


if __name__ == "__main__":
    key = jax.random.PRNGKey(0)
    m, dim, hidden, n_flows = 8, 8, 32, 4

    kx, kp = jax.random.split(key)
    x = jax.random.normal(kx, (m, dim), jnp.float32)
    flows = _init_flows(kp, n_flows, dim, hidden)

    zs, log_det = normalizing_flow_forward(x, flows)
    jax.block_until_ready(log_det)
    jax.block_until_ready(zs[-1])

    # correctness check against pure-JAX reference
    zs_ref, ld_ref = _reference_forward(x, flows)
    np.testing.assert_allclose(np.asarray(log_det), np.asarray(ld_ref),
                               rtol=1e-5, atol=1e-5)
    for z, zr in zip(zs, zs_ref):
        np.testing.assert_allclose(np.asarray(z), np.asarray(zr),
                                   rtol=1e-5, atol=1e-5)

    print("KERNEL_OK")
</pallas_src>

<mosaic_0001>
module attributes {stable_mosaic.version = 11 : i64} {
  func.func @_fused_flows_kernel(%arg0: i32, %arg1: memref<8x8xf32, #tpu.memory_space<vmem>>, %arg2: memref<4x8x32xf32, #tpu.memory_space<vmem>>, %arg3: memref<4x1x32xf32, #tpu.memory_space<vmem>>, %arg4: memref<4x32x16xf32, #tpu.memory_space<vmem>>, %arg5: memref<4x1x16xf32, #tpu.memory_space<vmem>>, %arg6: memref<4x8x8xf32, #tpu.memory_space<vmem>>, %arg7: memref<8x1xf32, #tpu.memory_space<vmem>>, %arg8: memref<8x8xf32, #tpu.memory_space<vmem>>, %arg9: memref<8x1xf32, #tpu.memory_space<vmem>>) attributes {dimension_semantics = [#tpu.dimension_semantics<arbitrary>], iteration_bounds = array<i64: 1>, scalar_prefetch = 0 : i64, scratch_operands = 2 : i64, tpu.core_type = #tpu.core_type<tc>, window_params = [{pipeline_mode = #tpu.pipeline_mode<synchronous>, transform_indices = @transform_0, window_bounds = array<i64: 8, 8>}, {transform_indices = @transform_1, window_bounds = array<i64: 4, 8, 32>}, {transform_indices = @transform_2, window_bounds = array<i64: 4, 1, 32>}, {transform_indices = @transform_3, window_bounds = array<i64: 4, 32, 16>}, {transform_indices = @transform_4, window_bounds = array<i64: 4, 1, 16>}, {transform_indices = @transform_5, window_bounds = array<i64: 4, 8, 8>}, {pipeline_mode = #tpu.pipeline_mode<synchronous>, transform_indices = @transform_6, window_bounds = array<i64: 8, 1>}]} {
    %c0_i32 = arith.constant 0 : i32
    %0 = arith.cmpi eq, %arg0, %c0_i32 : i32
    %1 = arith.extui %0 : i1 to i32
    %c0_i32_0 = arith.constant 0 : i32
    %2 = arith.cmpi ne, %1, %c0_i32_0 : i32
    scf.if %2 {
      %c0_86 = arith.constant 0 : index
      %c0_87 = arith.constant 0 : index
      %130 = vector.load %arg1[%c0_86, %c0_87] : memref<8x8xf32, #tpu.memory_space<vmem>>, vector<8x8xf32>
      %c0_88 = arith.constant 0 : index
      %c0_89 = arith.constant 0 : index
      %131 = vector.load %arg8[%c0_88, %c0_89] : memref<8x8xf32, #tpu.memory_space<vmem>>, vector<8x8xf32>
      tpu.vector_store %arg8[%c0_88, %c0_89], %130 {strides = array<i32>} : memref<8x8xf32, #tpu.memory_space<vmem>>, vector<8x8xf32>,
      %cst_90 = arith.constant 0.000000e+00 : f32
      %132 = vector.broadcast %cst_90 : f32 to vector<8x1xf32>
      %c0_91 = arith.constant 0 : index
      %c0_92 = arith.constant 0 : index
      %133 = vector.load %arg9[%c0_91, %c0_92] : memref<8x1xf32, #tpu.memory_space<vmem>>, vector<8x1xf32>
      tpu.vector_store %arg9[%c0_91, %c0_92], %132 {strides = array<i32>} : memref<8x1xf32, #tpu.memory_space<vmem>>, vector<8x1xf32>,
    } else {
    }
    %c0 = arith.constant 0 : index
    %c0_1 = arith.constant 0 : index
    %3 = vector.load %arg8[%c0, %c0_1] : memref<8x8xf32, #tpu.memory_space<vmem>>, vector<8x8xf32>
    %c0_2 = arith.constant 0 : index
    %c0_3 = arith.constant 0 : index
    %4 = vector.load %arg9[%c0_2, %c0_3] : memref<8x1xf32, #tpu.memory_space<vmem>>, vector<8x1xf32>
    %c0_4 = arith.constant 0 : index
    %c0_5 = arith.constant 0 : index
    %c0_6 = arith.constant 0 : index
    %5 = vector.load %arg2[%c0_4, %c0_5, %c0_6] : memref<4x8x32xf32, #tpu.memory_space<vmem>>, vector<1x8x32xf32>
    %6 = vector.shape_cast %5 : vector<1x8x32xf32> to vector<8x32xf32>
    %cst = arith.constant dense<0.000000e+00> : vector<8x32xf32>
    %7 = tpu.matmul %3, %6, %cst {dimension_numbers = #tpu.dot_dimension_numbers<[1], [0], [0], [1], [0, 0, 1, 1], [], []>} : vector<8x8xf32>, vector<8x32xf32>, vector<8x32xf32> -> vector<8x32xf32>
    %c0_7 = arith.constant 0 : index
    %c0_8 = arith.constant 0 : index
    %c0_9 = arith.constant 0 : index
    %8 = vector.load %arg3[%c0_7, %c0_8, %c0_9] : memref<4x1x32xf32, #tpu.memory_space<vmem>>, vector<1x1x32xf32>
    %9 = vector.shape_cast %8 : vector<1x1x32xf32> to vector<1x32xf32>
    %10 = vector.broadcast %9 : vector<1x32xf32> to vector<8x32xf32>
    %11 = arith.addf %7, %10 : vector<8x32xf32>
    %cst_10 = arith.constant 0.000000e+00 : f32
    %12 = vector.broadcast %cst_10 : f32 to vector<8x32xf32>
    %13 = arith.cmpf ogt, %11, %12 : vector<8x32xf32>
    %cst_11 = arith.constant 0.00999999977 : f32
    %14 = vector.broadcast %cst_11 : f32 to vector<8x32xf32>
    %15 = arith.mulf %14, %11 : vector<8x32xf32>
    %16 = arith.select %13, %11, %15 : vector<8x32xi1>, vector<8x32xf32>
    %c0_12 = arith.constant 0 : index
    %c0_13 = arith.constant 0 : index
    %c0_14 = arith.constant 0 : index
    %17 = vector.load %arg4[%c0_12, %c0_13, %c0_14] : memref<4x32x16xf32, #tpu.memory_space<vmem>>, vector<1x32x16xf32>
    %18 = vector.shape_cast %17 : vector<1x32x16xf32> to vector<32x16xf32>
    %cst_15 = arith.constant dense<0.000000e+00> : vector<8x16xf32>
    %19 = tpu.matmul %16, %18, %cst_15 {dimension_numbers = #tpu.dot_dimension_numbers<[1], [0], [0], [1], [0, 0, 1, 1], [], []>} : vector<8x32xf32>, vector<32x16xf32>, vector<8x16xf32> -> vector<8x16xf32>
    %c0_16 = arith.constant 0 : index
    %c0_17 = arith.constant 0 : index
    %c0_18 = arith.constant 0 : index
    %20 = vector.load %arg5[%c0_16, %c0_17, %c0_18] : memref<4x1x16xf32, #tpu.memory_space<vmem>>, vector<1x1x16xf32>
    %21 = vector.shape_cast %20 : vector<1x1x16xf32> to vector<1x16xf32>
    %22 = vector.broadcast %21 : vector<1x16xf32> to vector<8x16xf32>
    %23 = arith.addf %19, %22 : vector<8x16xf32>
    %24 = vector.extract_strided_slice %23 {offsets = [0, 0], sizes = [8, 8], strides = [1, 1]} : vector<8x16xf32> to vector<8x8xf32>
    %25 = vector.extract_strided_slice %23 {offsets = [0, 8], sizes = [8, 8], strides = [1, 1]} : vector<8x16xf32> to vector<8x8xf32>
    %26 = math.exp %24 : vector<8x8xf32>
    %27 = arith.mulf %3, %26 : vector<8x8xf32>
    %28 = arith.addf %27, %25 : vector<8x8xf32>
    %c0_19 = arith.constant 0 : index
    %c0_20 = arith.constant 0 : index
    %c0_21 = arith.constant 0 : index
    %29 = vector.load %arg6[%c0_19, %c0_20, %c0_21] : memref<4x8x8xf32, #tpu.memory_space<vmem>>, vector<1x8x8xf32>
    %30 = vector.shape_cast %29 : vector<1x8x8xf32> to vector<8x8xf32>
    %31 = vector.shape_cast %28 : vector<8x8xf32> to vector<1x8x8xf32>
    tpu.vector_store %arg6[%c0_19, %c0_20, %c0_21], %31 {strides = array<i32>} : memref<4x8x8xf32, #tpu.memory_space<vmem>>, vector<1x8x8xf32>,
    %cst_22 = arith.constant dense<0.000000e+00> : vector<8xf32>
    %32 = vector.multi_reduction <add>, %24, %cst_22 [1] : vector<8x8xf32> to vector<8xf32>
    %33 = vector.shape_cast %32 : vector<8xf32> to vector<8x1xf32>
    %34 = arith.addf %4, %33 : vector<8x1xf32>
    %c1 = arith.constant 1 : index
    %c0_23 = arith.constant 0 : index
    %c0_24 = arith.constant 0 : index
    %35 = vector.load %arg2[%c1, %c0_23, %c0_24] : memref<4x8x32xf32, #tpu.memory_space<vmem>>, vector<1x8x32xf32>
    %36 = vector.shape_cast %35 : vector<1x8x32xf32> to vector<8x32xf32>
    %cst_25 = arith.constant dense<0.000000e+00> : vector<8x32xf32>
    %37 = tpu.matmul %28, %36, %cst_25 {dimension_numbers = #tpu.dot_dimension_numbers<[1], [0], [0], [1], [0, 0, 1, 1], [], []>} : vector<8x8xf32>, vector<8x32xf32>, vector<8x32xf32> -> vector<8x32xf32>
    %c1_26 = arith.constant 1 : index
    %c0_27 = arith.constant 0 : index
    %c0_28 = arith.constant 0 : index
    %38 = vector.load %arg3[%c1_26, %c0_27, %c0_28] : memref<4x1x32xf32, #tpu.memory_space<vmem>>, vector<1x1x32xf32>
    %39 = vector.shape_cast %38 : vector<1x1x32xf32> to vector<1x32xf32>
    %40 = vector.broadcast %39 : vector<1x32xf32> to vector<8x32xf32>
    %41 = arith.addf %37, %40 : vector<8x32xf32>
    %cst_29 = arith.constant 0.000000e+00 : f32
    %42 = vector.broadcast %cst_29 : f32 to vector<8x32xf32>
    %43 = arith.cmpf ogt, %41, %42 : vector<8x32xf32>
    %cst_30 = arith.constant 0.00999999977 : f32
    %44 = vector.broadcast %cst_30 : f32 to vector<8x32xf32>
    %45 = arith.mulf %44, %41 : vector<8x32xf32>
    %46 = arith.select %43, %41, %45 : vector<8x32xi1>, vector<8x32xf32>
    %c1_31 = arith.constant 1 : index
    %c0_32 = arith.constant 0 : index
    %c0_33 = arith.constant 0 : index
    %47 = vector.load %arg4[%c1_31, %c0_32, %c0_33] : memref<4x32x16xf32, #tpu.memory_space<vmem>>, vector<1x32x16xf32>
    %48 = vector.shape_cast %47 : vector<1x32x16xf32> to vector<32x16xf32>
    %cst_34 = arith.constant dense<0.000000e+00> : vector<8x16xf32>
    %49 = tpu.matmul %46, %48, %cst_34 {dimension_numbers = #tpu.dot_dimension_numbers<[1], [0], [0], [1], [0, 0, 1, 1], [], []>} : vector<8x32xf32>, vector<32x16xf32>, vector<8x16xf32> -> vector<8x16xf32>
    %c1_35 = arith.constant 1 : index
    %c0_36 = arith.constant 0 : index
    %c0_37 = arith.constant 0 : index
    %50 = vector.load %arg5[%c1_35, %c0_36, %c0_37] : memref<4x1x16xf32, #tpu.memory_space<vmem>>, vector<1x1x16xf32>
    %51 = vector.shape_cast %50 : vector<1x1x16xf32> to vector<1x16xf32>
    %52 = vector.broadcast %51 : vector<1x16xf32> to vector<8x16xf32>
    %53 = arith.addf %49, %52 : vector<8x16xf32>
    %54 = vector.extract_strided_slice %53 {offsets = [0, 0], sizes = [8, 8], strides = [1, 1]} : vector<8x16xf32> to vector<8x8xf32>
    %55 = vector.extract_strided_slice %53 {offsets = [0, 8], sizes = [8, 8], strides = [1, 1]} : vector<8x16xf32> to vector<8x8xf32>
    %56 = math.exp %54 : vector<8x8xf32>
    %57 = arith.mulf %28, %56 : vector<8x8xf32>
    %58 = arith.addf %57, %55 : vector<8x8xf32>
    %c1_38 = arith.constant 1 : index
    %c0_39 = arith.constant 0 : index
    %c0_40 = arith.constant 0 : index
    %59 = vector.load %arg6[%c1_38, %c0_39, %c0_40] : memref<4x8x8xf32, #tpu.memory_space<vmem>>, vector<1x8x8xf32>
    %60 = vector.shape_cast %59 : vector<1x8x8xf32> to vector<8x8xf32>
    %61 = vector.shape_cast %58 : vector<8x8xf32> to vector<1x8x8xf32>
    tpu.vector_store %arg6[%c1_38, %c0_39, %c0_40], %61 {strides = array<i32>} : memref<4x8x8xf32, #tpu.memory_space<vmem>>, vector<1x8x8xf32>,
    %cst_41 = arith.constant dense<0.000000e+00> : vector<8xf32>
    %62 = vector.multi_reduction <add>, %54, %cst_41 [1] : vector<8x8xf32> to vector<8xf32>
    %63 = vector.shape_cast %62 : vector<8xf32> to vector<8x1xf32>
    %64 = arith.addf %34, %63 : vector<8x1xf32>
    %c2 = arith.constant 2 : index
    %c0_42 = arith.constant 0 : index
    %c0_43 = arith.constant 0 : index
    %65 = vector.load %arg2[%c2, %c0_42, %c0_43] : memref<4x8x32xf32, #tpu.memory_space<vmem>>, vector<1x8x32xf32>
    %66 = vector.shape_cast %65 : vector<1x8x32xf32> to vector<8x32xf32>
    %cst_44 = arith.constant dense<0.000000e+00> : vector<8x32xf32>
    %67 = tpu.matmul %58, %66, %cst_44 {dimension_numbers = #tpu.dot_dimension_numbers<[1], [0], [0], [1], [0, 0, 1, 1], [], []>} : vector<8x8xf32>, vector<8x32xf32>, vector<8x32xf32> -> vector<8x32xf32>
    %c2_45 = arith.constant 2 : index
    %c0_46 = arith.constant 0 : index
    %c0_47 = arith.constant 0 : index
    %68 = vector.load %arg3[%c2_45, %c0_46, %c0_47] : memref<4x1x32xf32, #tpu.memory_space<vmem>>, vector<1x1x32xf32>
    %69 = vector.shape_cast %68 : vector<1x1x32xf32> to vector<1x32xf32>
    %70 = vector.broadcast %69 : vector<1x32xf32> to vector<8x32xf32>
    %71 = arith.addf %67, %70 : vector<8x32xf32>
    %cst_48 = arith.constant 0.000000e+00 : f32
    %72 = vector.broadcast %cst_48 : f32 to vector<8x32xf32>
    %73 = arith.cmpf ogt, %71, %72 : vector<8x32xf32>
    %cst_49 = arith.constant 0.00999999977 : f32
    %74 = vector.broadcast %cst_49 : f32 to vector<8x32xf32>
    %75 = arith.mulf %74, %71 : vector<8x32xf32>
    %76 = arith.select %73, %71, %75 : vector<8x32xi1>, vector<8x32xf32>
    %c2_50 = arith.constant 2 : index
    %c0_51 = arith.constant 0 : index
    %c0_52 = arith.constant 0 : index
    %77 = vector.load %arg4[%c2_50, %c0_51, %c0_52] : memref<4x32x16xf32, #tpu.memory_space<vmem>>, vector<1x32x16xf32>
    %78 = vector.shape_cast %77 : vector<1x32x16xf32> to vector<32x16xf32>
    %cst_53 = arith.constant dense<0.000000e+00> : vector<8x16xf32>
    %79 = tpu.matmul %76, %78, %cst_53 {dimension_numbers = #tpu.dot_dimension_numbers<[1], [0], [0], [1], [0, 0, 1, 1], [], []>} : vector<8x32xf32>, vector<32x16xf32>, vector<8x16xf32> -> vector<8x16xf32>
    %c2_54 = arith.constant 2 : index
    %c0_55 = arith.constant 0 : index
    %c0_56 = arith.constant 0 : index
    %80 = vector.load %arg5[%c2_54, %c0_55, %c0_56] : memref<4x1x16xf32, #tpu.memory_space<vmem>>, vector<1x1x16xf32>
    %81 = vector.shape_cast %80 : vector<1x1x16xf32> to vector<1x16xf32>
    %82 = vector.broadcast %81 : vector<1x16xf32> to vector<8x16xf32>
    %83 = arith.addf %79, %82 : vector<8x16xf32>
    %84 = vector.extract_strided_slice %83 {offsets = [0, 0], sizes = [8, 8], strides = [1, 1]} : vector<8x16xf32> to vector<8x8xf32>
    %85 = vector.extract_strided_slice %83 {offsets = [0, 8], sizes = [8, 8], strides = [1, 1]} : vector<8x16xf32> to vector<8x8xf32>
    %86 = math.exp %84 : vector<8x8xf32>
    %87 = arith.mulf %58, %86 : vector<8x8xf32>
    %88 = arith.addf %87, %85 : vector<8x8xf32>
    %c2_57 = arith.constant 2 : index
    %c0_58 = arith.constant 0 : index
    %c0_59 = arith.constant 0 : index
    %89 = vector.load %arg6[%c2_57, %c0_58, %c0_59] : memref<4x8x8xf32, #tpu.memory_space<vmem>>, vector<1x8x8xf32>
    %90 = vector.shape_cast %89 : vector<1x8x8xf32> to vector<8x8xf32>
    %91 = vector.shape_cast %88 : vector<8x8xf32> to vector<1x8x8xf32>
    tpu.vector_store %arg6[%c2_57, %c0_58, %c0_59], %91 {strides = array<i32>} : memref<4x8x8xf32, #tpu.memory_space<vmem>>, vector<1x8x8xf32>,
    %cst_60 = arith.constant dense<0.000000e+00> : vector<8xf32>
    %92 = vector.multi_reduction <add>, %84, %cst_60 [1] : vector<8x8xf32> to vector<8xf32>
    %93 = vector.shape_cast %92 : vector<8xf32> to vector<8x1xf32>
    %94 = arith.addf %64, %93 : vector<8x1xf32>
    %c3 = arith.constant 3 : index
    %c0_61 = arith.constant 0 : index
    %c0_62 = arith.constant 0 : index
    %95 = vector.load %arg2[%c3, %c0_61, %c0_62] : memref<4x8x32xf32, #tpu.memory_space<vmem>>, vector<1x8x32xf32>
    %96 = vector.shape_cast %95 : vector<1x8x32xf32> to vector<8x32xf32>
    %cst_63 = arith.constant dense<0.000000e+00> : vector<8x32xf32>
    %97 = tpu.matmul %88, %96, %cst_63 {dimension_numbers = #tpu.dot_dimension_numbers<[1], [0], [0], [1], [0, 0, 1, 1], [], []>} : vector<8x8xf32>, vector<8x32xf32>, vector<8x32xf32> -> vector<8x32xf32>
    %c3_64 = arith.constant 3 : index
    %c0_65 = arith.constant 0 : index
    %c0_66 = arith.constant 0 : index
    %98 = vector.load %arg3[%c3_64, %c0_65, %c0_66] : memref<4x1x32xf32, #tpu.memory_space<vmem>>, vector<1x1x32xf32>
    %99 = vector.shape_cast %98 : vector<1x1x32xf32> to vector<1x32xf32>
    %100 = vector.broadcast %99 : vector<1x32xf32> to vector<8x32xf32>
    %101 = arith.addf %97, %100 : vector<8x32xf32>
    %cst_67 = arith.constant 0.000000e+00 : f32
    %102 = vector.broadcast %cst_67 : f32 to vector<8x32xf32>
    %103 = arith.cmpf ogt, %101, %102 : vector<8x32xf32>
    %cst_68 = arith.constant 0.00999999977 : f32
    %104 = vector.broadcast %cst_68 : f32 to vector<8x32xf32>
    %105 = arith.mulf %104, %101 : vector<8x32xf32>
    %106 = arith.select %103, %101, %105 : vector<8x32xi1>, vector<8x32xf32>
    %c3_69 = arith.constant 3 : index
    %c0_70 = arith.constant 0 : index
    %c0_71 = arith.constant 0 : index
    %107 = vector.load %arg4[%c3_69, %c0_70, %c0_71] : memref<4x32x16xf32, #tpu.memory_space<vmem>>, vector<1x32x16xf32>
    %108 = vector.shape_cast %107 : vector<1x32x16xf32> to vector<32x16xf32>
    %cst_72 = arith.constant dense<0.000000e+00> : vector<8x16xf32>
    %109 = tpu.matmul %106, %108, %cst_72 {dimension_numbers = #tpu.dot_dimension_numbers<[1], [0], [0], [1], [0, 0, 1, 1], [], []>} : vector<8x32xf32>, vector<32x16xf32>, vector<8x16xf32> -> vector<8x16xf32>
    %c3_73 = arith.constant 3 : index
    %c0_74 = arith.constant 0 : index
    %c0_75 = arith.constant 0 : index
    %110 = vector.load %arg5[%c3_73, %c0_74, %c0_75] : memref<4x1x16xf32, #tpu.memory_space<vmem>>, vector<1x1x16xf32>
    %111 = vector.shape_cast %110 : vector<1x1x16xf32> to vector<1x16xf32>
    %112 = vector.broadcast %111 : vector<1x16xf32> to vector<8x16xf32>
    %113 = arith.addf %109, %112 : vector<8x16xf32>
    %114 = vector.extract_strided_slice %113 {offsets = [0, 0], sizes = [8, 8], strides = [1, 1]} : vector<8x16xf32> to vector<8x8xf32>
    %115 = vector.extract_strided_slice %113 {offsets = [0, 8], sizes = [8, 8], strides = [1, 1]} : vector<8x16xf32> to vector<8x8xf32>
    %116 = math.exp %114 : vector<8x8xf32>
    %117 = arith.mulf %88, %116 : vector<8x8xf32>
    %118 = arith.addf %117, %115 : vector<8x8xf32>
    %c3_76 = arith.constant 3 : index
    %c0_77 = arith.constant 0 : index
    %c0_78 = arith.constant 0 : index
    %119 = vector.load %arg6[%c3_76, %c0_77, %c0_78] : memref<4x8x8xf32, #tpu.memory_space<vmem>>, vector<1x8x8xf32>
    %120 = vector.shape_cast %119 : vector<1x8x8xf32> to vector<8x8xf32>
    %121 = vector.shape_cast %118 : vector<8x8xf32> to vector<1x8x8xf32>
    tpu.vector_store %arg6[%c3_76, %c0_77, %c0_78], %121 {strides = array<i32>} : memref<4x8x8xf32, #tpu.memory_space<vmem>>, vector<1x8x8xf32>,
    %cst_79 = arith.constant dense<0.000000e+00> : vector<8xf32>
    %122 = vector.multi_reduction <add>, %114, %cst_79 [1] : vector<8x8xf32> to vector<8xf32>
    %123 = vector.shape_cast %122 : vector<8xf32> to vector<8x1xf32>
    %124 = arith.addf %94, %123 : vector<8x1xf32>
    %c0_80 = arith.constant 0 : index
    %c0_81 = arith.constant 0 : index
    %125 = vector.load %arg8[%c0_80, %c0_81] : memref<8x8xf32, #tpu.memory_space<vmem>>, vector<8x8xf32>
    tpu.vector_store %arg8[%c0_80, %c0_81], %118 {strides = array<i32>} : memref<8x8xf32, #tpu.memory_space<vmem>>, vector<8x8xf32>,
    %c0_82 = arith.constant 0 : index
    %c0_83 = arith.constant 0 : index
    %126 = vector.load %arg9[%c0_82, %c0_83] : memref<8x1xf32, #tpu.memory_space<vmem>>, vector<8x1xf32>
    tpu.vector_store %arg9[%c0_82, %c0_83], %124 {strides = array<i32>} : memref<8x1xf32, #tpu.memory_space<vmem>>, vector<8x1xf32>,
    %c0_i32_84 = arith.constant 0 : i32
    %127 = arith.cmpi eq, %arg0, %c0_i32_84 : i32
    %128 = arith.extui %127 : i1 to i32
    %c0_i32_85 = arith.constant 0 : i32
    %129 = arith.cmpi ne, %128, %c0_i32_85 : i32
    scf.if %129 {
      %c0_86 = arith.constant 0 : index
      %c0_87 = arith.constant 0 : index
      %130 = vector.load %arg7[%c0_86, %c0_87] : memref<8x1xf32, #tpu.memory_space<vmem>>, vector<8x1xf32>
      tpu.vector_store %arg7[%c0_86, %c0_87], %124 {strides = array<i32>} : memref<8x1xf32, #tpu.memory_space<vmem>>, vector<8x1xf32>,
    } else {
    }
    return
  }
  func.func @transform_0(%arg0: i32) -> (i32, i32) {
    %c0_i32 = arith.constant 0 : i32
    %c0_i32_0 = arith.constant 0 : i32
    %c0_i32_1 = arith.constant 0 : i32
    return %c0_i32, %c0_i32_0 : i32, i32
  }
  func.func @transform_1(%arg0: i32) -> (i32, i32, i32) {
    %c0_i32 = arith.constant 0 : i32
    %c0_i32_0 = arith.constant 0 : i32
    %c0_i32_1 = arith.constant 0 : i32
    return %arg0, %c0_i32, %c0_i32_0 : i32, i32, i32
  }
  func.func @transform_2(%arg0: i32) -> (i32, i32, i32) {
    %c0_i32 = arith.constant 0 : i32
    %c0_i32_0 = arith.constant 0 : i32
    %c0_i32_1 = arith.constant 0 : i32
    return %arg0, %c0_i32, %c0_i32_0 : i32, i32, i32
  }
  func.func @transform_3(%arg0: i32) -> (i32, i32, i32) {
    %c0_i32 = arith.constant 0 : i32
    %c0_i32_0 = arith.constant 0 : i32
    %c0_i32_1 = arith.constant 0 : i32
    return %arg0, %c0_i32, %c0_i32_0 : i32, i32, i32
  }
  func.func @transform_4(%arg0: i32) -> (i32, i32, i32) {
    %c0_i32 = arith.constant 0 : i32
    %c0_i32_0 = arith.constant 0 : i32
    %c0_i32_1 = arith.constant 0 : i32
    return %arg0, %c0_i32, %c0_i32_0 : i32, i32, i32
  }
  func.func @transform_5(%arg0: i32) -> (i32, i32, i32) {
    %c0_i32 = arith.constant 0 : i32
    %c0_i32_0 = arith.constant 0 : i32
    %c0_i32_1 = arith.constant 0 : i32
    return %arg0, %c0_i32, %c0_i32_0 : i32, i32, i32
  }
  func.func @transform_6(%arg0: i32) -> (i32, i32) {
    %c0_i32 = arith.constant 0 : i32
    %c0_i32_0 = arith.constant 0 : i32
    %c0_i32_1 = arith.constant 0 : i32
    return %c0_i32, %c0_i32_0 : i32, i32
  }
}

</mosaic_0001>

<llo_original>
// kernel: tpu_custom_call.1
$region0: #{tpu_custom_call.1}
  #allocation0 [shape = 'u32[]', space=smem, size = 0x4, offset = 0x4, fixed_abs, tag = 'smem constant byte address 0x4 - core index']
  #allocation1 [shape = 'u32[144,128]{1,0:T(1,128)}', space=vmem, size = 0x12000, scoped, tag = 'internal scratch']
  #allocation2 [shape = 'f32[8,8]{1,0:T(8,128)}', space=vmem, size = 0x1000, scoped, tag = 'scratch operand']
  #allocation3 [shape = 'f32[8,1]{1,0:T(8,128)}', space=vmem, size = 0x1000, scoped, tag = 'scratch operand']
  %s0 = inlined_call_operand.vmem [shape: f32[8,8], index: 0, kind: input, shape index: {}]
  %s1 = inlined_call_operand.vmem [shape: f32[4,8,32], index: 1, kind: input, shape index: {}]
  %s2 = inlined_call_operand.vmem [shape: f32[4,1,32], index: 2, kind: input, shape index: {}]
  %s3 = inlined_call_operand.vmem [shape: f32[4,32,16], index: 3, kind: input, shape index: {}]
  %s4 = inlined_call_operand.vmem [shape: f32[4,1,16], index: 4, kind: input, shape index: {}]
  %s5 = inlined_call_operand.hbm [shape: f32[4,8,8], index: 5, kind: output, shape index: {0}]
  %s6 = inlined_call_operand.vmem [shape: f32[8,1], index: 6, kind: output, shape index: {1}]
  %7 = xla_tuple %s5, %s6
  %s8 = sld [smem:[#allocation0]]
  $region46: #{tpu_custom_call.1} parent=0
    _
  %s10 = ssub.s32 1, %s8
  %s11 = scalar_select 0, %s10, %s8
  $region1: #{tpu_custom_call.1} parent=0
    #allocation4 [shape = 'u8[16384]{0}', space=vmem, size = 0x4000, scoped, tag = 'output window, operand 0, single buffered']
    #allocation5 [shape = 's32[1]{0}', space=sflag, size = 0x4, scoped, tag = 'scoped memory for tpu_custom_call.1']
    %12 = vsyncpa [#allocation5], 0
    // Predicated region
    $region2: #{tpu_custom_call.1} parent=1 // pred_check
      _
    $region3: #{tpu_custom_call.1} parent=1 // pred_check_branch
      %14 = sbr.rel (0) target = $region5
    $region4: #{tpu_custom_call.1} parent=1 // pred_region
      _
    $region5: #{tpu_custom_call.1} parent=1 // pred_fallthru
      _
    // Predicated region
    $region6: #{tpu_custom_call.1} parent=1 // pred_check
      _
    $region7: #{tpu_custom_call.1} parent=1 // pred_check_branch
      %16 = sbr.rel (0) target = $region9
    $region8: #{tpu_custom_call.1} parent=1 // pred_region
      _
    $region9: #{tpu_custom_call.1} parent=1 // pred_fallthru
      _
    // Predicated region
    $region10: #{tpu_custom_call.1} parent=1 // pred_check
      _
    $region11: #{tpu_custom_call.1} parent=1 // pred_check_branch
      %18 = sbr.rel (0) target = $region13
    $region12: #{tpu_custom_call.1} parent=1 // pred_region
      _
    $region13: #{tpu_custom_call.1} parent=1 // pred_fallthru
      _
    // Predicated region
    $region14: #{tpu_custom_call.1} parent=1 // pred_check
      _
    $region15: #{tpu_custom_call.1} parent=1 // pred_check_branch
      %20 = sbr.rel (0) target = $region17
    $region16: #{tpu_custom_call.1} parent=1 // pred_region
      _
    $region17: #{tpu_custom_call.1} parent=1 // pred_fallthru
      _
    // Predicated region
    $region18: #{tpu_custom_call.1} parent=1 // pred_check
      _
    $region19: #{tpu_custom_call.1} parent=1 // pred_check_branch
      %22 = sbr.rel (0) target = $region21
    $region20: #{tpu_custom_call.1} parent=1 // pred_region
      _
    $region21: #{tpu_custom_call.1} parent=1 // pred_fallthru
      _
    %p23 = scmp.eq.s32.totalorder 0, 0
    // Predicated region
    $region22: #{tpu_custom_call.1} parent=1 // pred_check
      %p24 = pneg %p23
    $region23: #{tpu_custom_call.1} parent=1 // pred_check_branch
      %26 = sbr.rel (%p24) target = $region25
    $region24: #{tpu_custom_call.1} parent=1 // pred_region
      %v27 = vld [vmem:[%s0] sm:$0xff]
      %vm28 = vcmask 64512
      %29 = vst.msk [vmem:[#allocation2] sm:$0xff] %vm28, %v27
      %vm30 = vcmask 7168
      %31 = vst.msk [vmem:[#allocation3] sm:$0xff] %vm30, 0.0
    $region25: #{tpu_custom_call.1} parent=1 // pred_fallthru
      _
    %v32 = vld [vmem:[#allocation2] sm:$0xff]
    %v33 = vld [vmem:[#allocation3] sm:$0xff]
    %v34 = vld [vmem:[%s1] sm:$0xff]
    %v35 = vld [vmem:[%s2] sm:$0x1]
    %v37 = vlaneseq
    %v38 = vshrl.u32 %v37, 7
    %v39 = vsub.s32 0, %v38
    %v40 = vrot.slane %v35, %v39
    %vm42 = vcmask 64512
    %v44 = vsel %vm42, %v32, 0
    %46 = vmatprep.subr.mxu0 0.0
    %47 = vmatpush1.msra.mxu0 0.0
    %48 = vmatprep.subr.mxu0 0.0
    %49 = vmatpush1.msra.mxu0 0.0
    %50 = vmatprep.subr.mxu0 0.0
    %51 = vmatpush1.msra.mxu0 0.0
    %52 = vmatprep.subr.mxu0 0.0
    %53 = vmatpush1.msra.mxu0 0.0
    %54 = vmatprep.subr.mxu0 0.0
    %55 = vmatpush1.msra.mxu0 0.0
    %56 = vmatprep.subr.mxu0 0.0
    %57 = vmatpush1.msra.mxu0 0.0
    %58 = vmatprep.subr.mxu0 0.0
    %59 = vmatpush1.msra.mxu0 0.0
    %60 = vmatprep.subr.mxu0 0.0
    %61 = vmatpush1.msra.mxu0 0.0
    %62 = vmatprep.subr.mxu0 0.0
    %63 = vmatpush1.msra.mxu0 0.0
    %64 = vmatprep.subr.mxu0 0.0
    %65 = vmatpush1.msra.mxu0 0.0
    %66 = vmatprep.subr.mxu0 0.0
    %67 = vmatpush1.msra.mxu0 0.0
    %68 = vmatprep.subr.mxu0 0.0
    %69 = vmatpush1.msra.mxu0 0.0
    %70 = vmatprep.subr.mxu0 0.0
    %71 = vmatpush1.msra.mxu0 0.0
    %72 = vmatprep.subr.mxu0 0.0
    %73 = vmatpush1.msra.mxu0 0.0
    %74 = vmatprep.subr.mxu0 0.0
    %75 = vmatpush1.msra.mxu0 0.0
    %76 = vmatprep.subr.mxu0 0.0
    %77 = vmatpush1.msra.mxu0 %v34
    %78 = vmatprep.subr.mxu0 0.0
    %79 = vmatpush2.msra.mxu0 0.0
    %80 = vmatprep.subr.mxu0 0.0
    %81 = vmatpush2.msra.mxu0 0.0
    %82 = vmatprep.subr.mxu0 0.0
    %83 = vmatpush2.msra.mxu0 0.0
    %84 = vmatprep.subr.mxu0 0.0
    %85 = vmatpush2.msra.mxu0 0.0
    %86 = vmatprep.subr.mxu0 0.0
    %87 = vmatpush2.msra.mxu0 0.0
    %88 = vmatprep.subr.mxu0 0.0
    %89 = vmatpush2.msra.mxu0 0.0
    %90 = vmatprep.subr.mxu0 0.0
    %91 = vmatpush2.msra.mxu0 0.0
    %92 = vmatprep.subr.mxu0 0.0
    %93 = vmatpush2.msra.mxu0 0.0
    %94 = vmatprep.subr.mxu0 0.0
    %95 = vmatpush2.msra.mxu0 0.0
    %96 = vmatprep.subr.mxu0 0.0
    %97 = vmatpush2.msra.mxu0 0.0
    %98 = vmatprep.subr.mxu0 0.0
    %99 = vmatpush2.msra.mxu0 0.0
    %100 = vmatprep.subr.mxu0 0.0
    %101 = vmatpush2.msra.mxu0 0.0
    %102 = vmatprep.subr.mxu0 0.0
    %103 = vmatpush2.msra.mxu0 0.0
    %104 = vmatprep.subr.mxu0 0.0
    %105 = vmatpush2.msra.mxu0 0.0
    %106 = vmatprep.subr.mxu0 0.0
    %107 = vmatpush2.msra.mxu0 0.0
    %108 = vmatprep.subr.mxu0 0.0
    %109 = vmatpush2.msra.mxu0 0.0
    %110 = vmatprep.mubr.f32.mxu0 0.0
    %111 = vmatmul.mubr.f32.gmra.mxu0 %v44
    %v112 = vpop.f32.mrf.mxu0
    %v113 = vadd.f32 %v40, %v112
    %v114 = vpop.f32.mrf.mxu0
    %115 = vdwg.mxu0
    %vm116 = vcmp.gt.f32.partialorder %v113, 0.0
    %v117 = vmul.f32 %v113, 0.01
    %v118 = vsel %vm116, %v113, %v117
    %v119 = vld [vmem:[%s3] sm:$0xff]
    %v120 = vld [vmem:[%s3 + $0x8] sm:$0xff]
    %v121 = vld [vmem:[%s3 + $0x10] sm:$0xff]
    %v122 = vld [vmem:[%s3 + $0x18] sm:$0xff]
    %v123 = vld [vmem:[%s4] sm:$0x1]
    %v125 = vlaneseq
    %v126 = vshrl.u32 %v125, 7
    %v127 = vsub.s32 0, %v126
    %v128 = vrot.slane %v123, %v127
    %vm130 = vcmask 261120
    %v132 = vsel %vm130, %v118, 0
    %134 = vmatprep.subr.mxu0 0.0
    %135 = vmatpush1.msra.mxu0 0.0
    %136 = vmatprep.subr.mxu0 0.0
    %137 = vmatpush1.msra.mxu0 0.0
    %138 = vmatprep.subr.mxu0 0.0
    %139 = vmatpush1.msra.mxu0 0.0
    %140 = vmatprep.subr.mxu0 0.0
    %141 = vmatpush1.msra.mxu0 0.0
    %142 = vmatprep.subr.mxu0 0.0
    %143 = vmatpush1.msra.mxu0 0.0
    %144 = vmatprep.subr.mxu0 0.0
    %145 = vmatpush1.msra.mxu0 0.0
    %146 = vmatprep.subr.mxu0 0.0
    %147 = vmatpush1.msra.mxu0 0.0
    %148 = vmatprep.subr.mxu0 0.0
    %149 = vmatpush1.msra.mxu0 0.0
    %150 = vmatprep.subr.mxu0 0.0
    %151 = vmatpush1.msra.mxu0 0.0
    %152 = vmatprep.subr.mxu0 0.0
    %153 = vmatpush1.msra.mxu0 0.0
    %154 = vmatprep.subr.mxu0 0.0
    %155 = vmatpush1.msra.mxu0 0.0
    %156 = vmatprep.subr.mxu0 0.0
    %157 = vmatpush1.msra.mxu0 0.0
    %158 = vmatprep.subr.mxu0 0.0
    %159 = vmatpush1.msra.mxu0 %v122
    %160 = vmatprep.subr.mxu0 0.0
    %161 = vmatpush1.msra.mxu0 %v121
    %162 = vmatprep.subr.mxu0 0.0
    %163 = vmatpush1.msra.mxu0 %v120
    %164 = vmatprep.subr.mxu0 0.0
    %165 = vmatpush1.msra.mxu0 %v119
    %166 = vmatprep.subr.mxu0 0.0
    %167 = vmatpush2.msra.mxu0 0.0
    %168 = vmatprep.subr.mxu0 0.0
    %169 = vmatpush2.msra.mxu0 0.0
    %170 = vmatprep.subr.mxu0 0.0
    %171 = vmatpush2.msra.mxu0 0.0
    %172 = vmatprep.subr.mxu0 0.0
    %173 = vmatpush2.msra.mxu0 0.0
    %174 = vmatprep.subr.mxu0 0.0
    %175 = vmatpush2.msra.mxu0 0.0
    %176 = vmatprep.subr.mxu0 0.0
    %177 = vmatpush2.msra.mxu0 0.0
    %178 = vmatprep.subr.mxu0 0.0
    %179 = vmatpush2.msra.mxu0 0.0
    %180 = vmatprep.subr.mxu0 0.0
    %181 = vmatpush2.msra.mxu0 0.0
    %182 = vmatprep.subr.mxu0 0.0
    %183 = vmatpush2.msra.mxu0 0.0
    %184 = vmatprep.subr.mxu0 0.0
    %185 = vmatpush2.msra.mxu0 0.0
    %186 = vmatprep.subr.mxu0 0.0
    %187 = vmatpush2.msra.mxu0 0.0
    %188 = vmatprep.subr.mxu0 0.0
    %189 = vmatpush2.msra.mxu0 0.0
    %190 = vmatprep.subr.mxu0 0.0
    %191 = vmatpush2.msra.mxu0 0.0
    %192 = vmatprep.subr.mxu0 0.0
    %193 = vmatpush2.msra.mxu0 0.0
    %194 = vmatprep.subr.mxu0 0.0
    %195 = vmatpush2.msra.mxu0 0.0
    %196 = vmatprep.subr.mxu0 0.0
    %197 = vmatpush2.msra.mxu0 0.0
    %198 = vmatprep.mubr.f32.mxu0 0.0
    %199 = vmatmul.mubr.f32.gmra.mxu0 %v132
    %v200 = vpop.f32.mrf.mxu0
    %v201 = vadd.f32 %v128, %v200
    %v202 = vpop.f32.mrf.mxu0
    %203 = vdwg.mxu0
    %v204 = vmul.f32 %v201, 1.442695
    %v205 = vpow.pop %v204
    %v206 = vmul.f32 %v32, %v205
    %208 = vrot.lane.b32.xlu0 %v201, 120
    %v209 = vpop.permute.xlu0 %208
    %v211 = vadd.f32 %v206, %v209
    %212 = vst.msk [vmem:[#allocation4] sm:$0xff] %vm42, %v211
    %v213 = vsel %vm42, %v201, 0.0
    %214 = vadd.xlane.f32.xlu0 %v213
    %v215 = vpop.xlane.xlu0 %214
    %v216 = vadd.f32 %v33, %v215
    %s217 = scalar_lea.vmem %s1, 8
    %v218 = vld [vmem:[%s217] sm:$0xff]
    %s219 = scalar_lea.vmem %s2, 1
    %v220 = vld [vmem:[%s219] sm:$0x1]
    %v222 = vlaneseq
    %v223 = vshrl.u32 %v222, 7
    %v224 = vsub.s32 0, %v223
    %v225 = vrot.slane %v220, %v224
    %v228 = vsel %vm42, %v211, 0
    %230 = vmatprep.subr.mxu0 0.0
    %231 = vmatpush1.msra.mxu0 0.0
    %232 = vmatprep.subr.mxu0 0.0
    %233 = vmatpush1.msra.mxu0 0.0
    %234 = vmatprep.subr.mxu0 0.0
    %235 = vmatpush1.msra.mxu0 0.0
    %236 = vmatprep.subr.mxu0 0.0
    %237 = vmatpush1.msra.mxu0 0.0
    %238 = vmatprep.subr.mxu0 0.0
    %239 = vmatpush1.msra.mxu0 0.0
    %240 = vmatprep.subr.mxu0 0.0
    %241 = vmatpush1.msra.mxu0 0.0
    %242 = vmatprep.subr.mxu0 0.0
    %243 = vmatpush1.msra.mxu0 0.0
    %244 = vmatprep.subr.mxu0 0.0
    %245 = vmatpush1.msra.mxu0 0.0
    %246 = vmatprep.subr.mxu0 0.0
    %247 = vmatpush1.msra.mxu0 0.0
    %248 = vmatprep.subr.mxu0 0.0
    %249 = vmatpush1.msra.mxu0 0.0
    %250 = vmatprep.subr.mxu0 0.0
    %251 = vmatpush1.msra.mxu0 0.0
    %252 = vmatprep.subr.mxu0 0.0
    %253 = vmatpush1.msra.mxu0 0.0
    %254 = vmatprep.subr.mxu0 0.0
    %255 = vmatpush1.msra.mxu0 0.0
    %256 = vmatprep.subr.mxu0 0.0
    %257 = vmatpush1.msra.mxu0 0.0
    %258 = vmatprep.subr.mxu0 0.0
    %259 = vmatpush1.msra.mxu0 0.0
    %260 = vmatprep.subr.mxu0 0.0
    %261 = vmatpush1.msra.mxu0 %v218
    %262 = vmatprep.subr.mxu0 0.0
    %263 = vmatpush2.msra.mxu0 0.0
    %264 = vmatprep.subr.mxu0 0.0
    %265 = vmatpush2.msra.mxu0 0.0
    %266 = vmatprep.subr.mxu0 0.0
    %267 = vmatpush2.msra.mxu0 0.0
    %268 = vmatprep.subr.mxu0 0.0
    %269 = vmatpush2.msra.mxu0 0.0
    %270 = vmatprep.subr.mxu0 0.0
    %271 = vmatpush2.msra.mxu0 0.0
    %272 = vmatprep.subr.mxu0 0.0
    %273 = vmatpush2.msra.mxu0 0.0
    %274 = vmatprep.subr.mxu0 0.0
    %275 = vmatpush2.msra.mxu0 0.0
    %276 = vmatprep.subr.mxu0 0.0
    %277 = vmatpush2.msra.mxu0 0.0
    %278 = vmatprep.subr.mxu0 0.0
    %279 = vmatpush2.msra.mxu0 0.0
    %280 = vmatprep.subr.mxu0 0.0
    %281 = vmatpush2.msra.mxu0 0.0
    %282 = vmatprep.subr.mxu0 0.0
    %283 = vmatpush2.msra.mxu0 0.0
    %284 = vmatprep.subr.mxu0 0.0
    %285 = vmatpush2.msra.mxu0 0.0
    %286 = vmatprep.subr.mxu0 0.0
    %287 = vmatpush2.msra.mxu0 0.0
    %288 = vmatprep.subr.mxu0 0.0
    %289 = vmatpush2.msra.mxu0 0.0
    %290 = vmatprep.subr.mxu0 0.0
    %291 = vmatpush2.msra.mxu0 0.0
    %292 = vmatprep.subr.mxu0 0.0
    %293 = vmatpush2.msra.mxu0 0.0
    %294 = vmatprep.mubr.f32.mxu0 0.0
    %295 = vmatmul.mubr.f32.gmra.mxu0 %v228
    %v296 = vpop.f32.mrf.mxu0
    %v297 = vadd.f32 %v225, %v296
    %v298 = vpop.f32.mrf.mxu0
    %299 = vdwg.mxu0
    %vm300 = vcmp.gt.f32.partialorder %v297, 0.0
    %v301 = vmul.f32 %v297, 0.01
    %v302 = vsel %vm300, %v297, %v301
    %s303 = scalar_lea.vmem %s3, 32
    %v304 = vld [vmem:[%s303] sm:$0xff]
    %v305 = vld [vmem:[%s303 + $0x8] sm:$0xff]
    %v306 = vld [vmem:[%s303 + $0x10] sm:$0xff]
    %v307 = vld [vmem:[%s303 + $0x18] sm:$0xff]
    %s308 = scalar_lea.vmem %s4, 1
    %v309 = vld [vmem:[%s308] sm:$0x1]
    %v311 = vlaneseq
    %v312 = vshrl.u32 %v311, 7
    %v313 = vsub.s32 0, %v312
    %v314 = vrot.slane %v309, %v313
    %v317 = vsel %vm130, %v302, 0
    %319 = vmatprep.subr.mxu0 0.0
    %320 = vmatpush1.msra.mxu0 0.0
    %321 = vmatprep.subr.mxu0 0.0
    %322 = vmatpush1.msra.mxu0 0.0
    %323 = vmatprep.subr.mxu0 0.0
    %324 = vmatpush1.msra.mxu0 0.0
    %325 = vmatprep.subr.mxu0 0.0
    %326 = vmatpush1.msra.mxu0 0.0
    %327 = vmatprep.subr.mxu0 0.0
    %328 = vmatpush1.msra.mxu0 0.0
    %329 = vmatprep.subr.mxu0 0.0
    %330 = vmatpush1.msra.mxu0 0.0
    %331 = vmatprep.subr.mxu0 0.0
    %332 = vmatpush1.msra.mxu0 0.0
    %333 = vmatprep.subr.mxu0 0.0
    %334 = vmatpush1.msra.mxu0 0.0
    %335 = vmatprep.subr.mxu0 0.0
    %336 = vmatpush1.msra.mxu0 0.0
    %337 = vmatprep.subr.mxu0 0.0
    %338 = vmatpush1.msra.mxu0 0.0
    %339 = vmatprep.subr.mxu0 0.0
    %340 = vmatpush1.msra.mxu0 0.0
    %341 = vmatprep.subr.mxu0 0.0
    %342 = vmatpush1.msra.mxu0 0.0
    %343 = vmatprep.subr.mxu0 0.0
    %344 = vmatpush1.msra.mxu0 %v307
    %345 = vmatprep.subr.mxu0 0.0
    %346 = vmatpush1.msra.mxu0 %v306
    %347 = vmatprep.subr.mxu0 0.0
    %348 = vmatpush1.msra.mxu0 %v305
    %349 = vmatprep.subr.mxu0 0.0
    %350 = vmatpush1.msra.mxu0 %v304
    %351 = vmatprep.subr.mxu0 0.0
    %352 = vmatpush2.msra.mxu0 0.0
    %353 = vmatprep.subr.mxu0 0.0
    %354 = vmatpush2.msra.mxu0 0.0
    %355 = vmatprep.subr.mxu0 0.0
    %356 = vmatpush2.msra.mxu0 0.0
    %357 = vmatprep.subr.mxu0 0.0
    %358 = vmatpush2.msra.mxu0 0.0
    %359 = vmatprep.subr.mxu0 0.0
    %360 = vmatpush2.msra.mxu0 0.0
    %361 = vmatprep.subr.mxu0 0.0
    %362 = vmatpush2.msra.mxu0 0.0
    %363 = vmatprep.subr.mxu0 0.0
    %364 = vmatpush2.msra.mxu0 0.0
    %365 = vmatprep.subr.mxu0 0.0
    %366 = vmatpush2.msra.mxu0 0.0
    %367 = vmatprep.subr.mxu0 0.0
    %368 = vmatpush2.msra.mxu0 0.0
    %369 = vmatprep.subr.mxu0 0.0
    %370 = vmatpush2.msra.mxu0 0.0
    %371 = vmatprep.subr.mxu0 0.0
    %372 = vmatpush2.msra.mxu0 0.0
    %373 = vmatprep.subr.mxu0 0.0
    %374 = vmatpush2.msra.mxu0 0.0
    %375 = vmatprep.subr.mxu0 0.0
    %376 = vmatpush2.msra.mxu0 0.0
    %377 = vmatprep.subr.mxu0 0.0
    %378 = vmatpush2.msra.mxu0 0.0
    %379 = vmatprep.subr.mxu0 0.0
    %380 = vmatpush2.msra.mxu0 0.0
    %381 = vmatprep.subr.mxu0 0.0
    %382 = vmatpush2.msra.mxu0 0.0
    %383 = vmatprep.mubr.f32.mxu0 0.0
    %384 = vmatmul.mubr.f32.gmra.mxu0 %v317
    %v385 = vpop.f32.mrf.mxu0
    %v386 = vadd.f32 %v314, %v385
    %v387 = vpop.f32.mrf.mxu0
    %388 = vdwg.mxu0
    %v389 = vmul.f32 %v386, 1.442695
    %v390 = vpow.pop %v389
    %v391 = vmul.f32 %v211, %v390
    %393 = vrot.lane.b32.xlu0 %v386, 120
    %v394 = vpop.permute.xlu0 %393
    %v396 = vadd.f32 %v391, %v394
    %s397 = scalar_lea.vmem [#allocation4], 8
    %398 = vst.msk [vmem:[%s397] sm:$0xff] %vm42, %v396
    %v399 = vsel %vm42, %v386, 0.0
    %400 = vadd.xlane.f32.xlu0 %v399
    %v401 = vpop.xlane.xlu0 %400
    %v402 = vadd.f32 %v216, %v401
    %s403 = scalar_lea.vmem %s1, 16
    %v404 = vld [vmem:[%s403] sm:$0xff]
    %s405 = scalar_lea.vmem %s2, 2
    %v406 = vld [vmem:[%s405] sm:$0x1]
    %v408 = vlaneseq
    %v409 = vshrl.u32 %v408, 7
    %v410 = vsub.s32 0, %v409
    %v411 = vrot.slane %v406, %v410
    %v414 = vsel %vm42, %v396, 0
    %416 = vmatprep.subr.mxu0 0.0
    %417 = vmatpush1.msra.mxu0 0.0
    %418 = vmatprep.subr.mxu0 0.0
    %419 = vmatpush1.msra.mxu0 0.0
    %420 = vmatprep.subr.mxu0 0.0
    %421 = vmatpush1.msra.mxu0 0.0
    %422 = vmatprep.subr.mxu0 0.0
    %423 = vmatpush1.msra.mxu0 0.0
    %424 = vmatprep.subr.mxu0 0.0
    %425 = vmatpush1.msra.mxu0 0.0
    %426 = vmatprep.subr.mxu0 0.0
    %427 = vmatpush1.msra.mxu0 0.0
    %428 = vmatprep.subr.mxu0 0.0
    %429 = vmatpush1.msra.mxu0 0.0
    %430 = vmatprep.subr.mxu0 0.0
    %431 = vmatpush1.msra.mxu0 0.0
    %432 = vmatprep.subr.mxu0 0.0
    %433 = vmatpush1.msra.mxu0 0.0
    %434 = vmatprep.subr.mxu0 0.0
    %435 = vmatpush1.msra.mxu0 0.0
    %436 = vmatprep.subr.mxu0 0.0
    %437 = vmatpush1.msra.mxu0 0.0
    %438 = vmatprep.subr.mxu0 0.0
    %439 = vmatpush1.msra.mxu0 0.0
    %440 = vmatprep.subr.mxu0 0.0
    %441 = vmatpush1.msra.mxu0 0.0
    %442 = vmatprep.subr.mxu0 0.0
    %443 = vmatpush1.msra.mxu0 0.0
    %444 = vmatprep.subr.mxu0 0.0
    %445 = vmatpush1.msra.mxu0 0.0
    %446 = vmatprep.subr.mxu0 0.0
    %447 = vmatpush1.msra.mxu0 %v404
    %448 = vmatprep.subr.mxu0 0.0
    %449 = vmatpush2.msra.mxu0 0.0
    %450 = vmatprep.subr.mxu0 0.0
    %451 = vmatpush2.msra.mxu0 0.0
    %452 = vmatprep.subr.mxu0 0.0
    %453 = vmatpush2.msra.mxu0 0.0
    %454 = vmatprep.subr.mxu0 0.0
    %455 = vmatpush2.msra.mxu0 0.0
    %456 = vmatprep.subr.mxu0 0.0
    %457 = vmatpush2.msra.mxu0 0.0
    %458 = vmatprep.subr.mxu0 0.0
    %459 = vmatpush2.msra.mxu0 0.0
    %460 = vmatprep.subr.mxu0 0.0
    %461 = vmatpush2.msra.mxu0 0.0
    %462 = vmatprep.subr.mxu0 0.0
    %463 = vmatpush2.msra.mxu0 0.0
    %464 = vmatprep.subr.mxu0 0.0
    %465 = vmatpush2.msra.mxu0 0.0
    %466 = vmatprep.subr.mxu0 0.0
    %467 = vmatpush2.msra.mxu0 0.0
    %468 = vmatprep.subr.mxu0 0.0
    %469 = vmatpush2.msra.mxu0 0.0
    %470 = vmatprep.subr.mxu0 0.0
    %471 = vmatpush2.msra.mxu0 0.0
    %472 = vmatprep.subr.mxu0 0.0
    %473 = vmatpush2.msra.mxu0 0.0
    %474 = vmatprep.subr.mxu0 0.0
    %475 = vmatpush2.msra.mxu0 0.0
    %476 = vmatprep.subr.mxu0 0.0
    %477 = vmatpush2.msra.mxu0 0.0
    %478 = vmatprep.subr.mxu0 0.0
    %479 = vmatpush2.msra.mxu0 0.0
    %480 = vmatprep.mubr.f32.mxu0 0.0
    %481 = vmatmul.mubr.f32.gmra.mxu0 %v414
    %v482 = vpop.f32.mrf.mxu0
    %v483 = vadd.f32 %v411, %v482
    %v484 = vpop.f32.mrf.mxu0
    %485 = vdwg.mxu0
    %vm486 = vcmp.gt.f32.partialorder %v483, 0.0
    %v487 = vmul.f32 %v483, 0.01
    %v488 = vsel %vm486, %v483, %v487
    %s489 = scalar_lea.vmem %s3, 64
    %v490 = vld [vmem:[%s489] sm:$0xff]
    %v491 = vld [vmem:[%s489 + $0x8] sm:$0xff]
    %v492 = vld [vmem:[%s489 + $0x10] sm:$0xff]
    %v493 = vld [vmem:[%s489 + $0x18] sm:$0xff]
    %s494 = scalar_lea.vmem %s4, 2
    %v495 = vld [vmem:[%s494] sm:$0x1]
    %v497 = vlaneseq
    %v498 = vshrl.u32 %v497, 7
    %v499 = vsub.s32 0, %v498
    %v500 = vrot.slane %v495, %v499
    %v503 = vsel %vm130, %v488, 0
    %505 = vmatprep.subr.mxu0 0.0
    %506 = vmatpush1.msra.mxu0 0.0
    %507 = vmatprep.subr.mxu0 0.0
    %508 = vmatpush1.msra.mxu0 0.0
    %509 = vmatprep.subr.mxu0 0.0
    %510 = vmatpush1.msra.mxu0 0.0
    %511 = vmatprep.subr.mxu0 0.0
    %512 = vmatpush1.msra.mxu0 0.0
    %513 = vmatprep.subr.mxu0 0.0
    %514 = vmatpush1.msra.mxu0 0.0
    %515 = vmatprep.subr.mxu0 0.0
    %516 = vmatpush1.msra.mxu0 0.0
    %517 = vmatprep.subr.mxu0 0.0
    %518 = vmatpush1.msra.mxu0 0.0
    %519 = vmatprep.subr.mxu0 0.0
    %520 = vmatpush1.msra.mxu0 0.0
    %521 = vmatprep.subr.mxu0 0.0
    %522 = vmatpush1.msra.mxu0 0.0
    %523 = vmatprep.subr.mxu0 0.0
    %524 = vmatpush1.msra.mxu0 0.0
    %525 = vmatprep.subr.mxu0 0.0
    %526 = vmatpush1.msra.mxu0 0.0
    %527 = vmatprep.subr.mxu0 0.0
    %528 = vmatpush1.msra.mxu0 0.0
    %529 = vmatprep.subr.mxu0 0.0
    %530 = vmatpush1.msra.mxu0 %v493
    %531 = vmatprep.subr.mxu0 0.0
    %532 = vmatpush1.msra.mxu0 %v492
    %533 = vmatprep.subr.mxu0 0.0
    %534 = vmatpush1.msra.mxu0 %v491
    %535 = vmatprep.subr.mxu0 0.0
    %536 = vmatpush1.msra.mxu0 %v490
    %537 = vmatprep.subr.mxu0 0.0
    %538 = vmatpush2.msra.mxu0 0.0
    %539 = vmatprep.subr.mxu0 0.0
    %540 = vmatpush2.msra.mxu0 0.0
    %541 = vmatprep.subr.mxu0 0.0
    %542 = vmatpush2.msra.mxu0 0.0
    %543 = vmatprep.subr.mxu0 0.0
    %544 = vmatpush2.msra.mxu0 0.0
    %545 = vmatprep.subr.mxu0 0.0
    %546 = vmatpush2.msra.mxu0 0.0
    %547 = vmatprep.subr.mxu0 0.0
    %548 = vmatpush2.msra.mxu0 0.0
    %549 = vmatprep.subr.mxu0 0.0
    %550 = vmatpush2.msra.mxu0 0.0
    %551 = vmatprep.subr.mxu0 0.0
    %552 = vmatpush2.msra.mxu0 0.0
    %553 = vmatprep.subr.mxu0 0.0
    %554 = vmatpush2.msra.mxu0 0.0
    %555 = vmatprep.subr.mxu0 0.0
    %556 = vmatpush2.msra.mxu0 0.0
    %557 = vmatprep.subr.mxu0 0.0
    %558 = vmatpush2.msra.mxu0 0.0
    %559 = vmatprep.subr.mxu0 0.0
    %560 = vmatpush2.msra.mxu0 0.0
    %561 = vmatprep.subr.mxu0 0.0
    %562 = vmatpush2.msra.mxu0 0.0
    %563 = vmatprep.subr.mxu0 0.0
    %564 = vmatpush2.msra.mxu0 0.0
    %565 = vmatprep.subr.mxu0 0.0
    %566 = vmatpush2.msra.mxu0 0.0
    %567 = vmatprep.subr.mxu0 0.0
    %568 = vmatpush2.msra.mxu0 0.0
    %569 = vmatprep.mubr.f32.mxu0 0.0
    %570 = vmatmul.mubr.f32.gmra.mxu0 %v503
    %v571 = vpop.f32.mrf.mxu0
    %v572 = vadd.f32 %v500, %v571
    %v573 = vpop.f32.mrf.mxu0
    %574 = vdwg.mxu0
    %v575 = vmul.f32 %v572, 1.442695
    %v576 = vpow.pop %v575
    %v577 = vmul.f32 %v396, %v576
    %579 = vrot.lane.b32.xlu0 %v572, 120
    %v580 = vpop.permute.xlu0 %579
    %v582 = vadd.f32 %v577, %v580
    %s583 = scalar_lea.vmem [#allocation4], 16
    %584 = vst.msk [vmem:[%s583] sm:$0xff] %vm42, %v582
    %v585 = vsel %vm42, %v572, 0.0
    %586 = vadd.xlane.f32.xlu0 %v585
    %v587 = vpop.xlane.xlu0 %586
    %v588 = vadd.f32 %v402, %v587
    %s589 = scalar_lea.vmem %s1, 24
    %v590 = vld [vmem:[%s589] sm:$0xff]
    %s591 = scalar_lea.vmem %s2, 3
    %v592 = vld [vmem:[%s591] sm:$0x1]
    %v594 = vlaneseq
    %v595 = vshrl.u32 %v594, 7
    %v596 = vsub.s32 0, %v595
    %v597 = vrot.slane %v592, %v596
    %v600 = vsel %vm42, %v582, 0
    %602 = vmatprep.subr.mxu0 0.0
    %603 = vmatpush1.msra.mxu0 0.0
    %604 = vmatprep.subr.mxu0 0.0
    %605 = vmatpush1.msra.mxu0 0.0
    %606 = vmatprep.subr.mxu0 0.0
    %607 = vmatpush1.msra.mxu0 0.0
    %608 = vmatprep.subr.mxu0 0.0
    %609 = vmatpush1.msra.mxu0 0.0
    %610 = vmatprep.subr.mxu0 0.0
    %611 = vmatpush1.msra.mxu0 0.0
    %612 = vmatprep.subr.mxu0 0.0
    %613 = vmatpush1.msra.mxu0 0.0
    %614 = vmatprep.subr.mxu0 0.0
    %615 = vmatpush1.msra.mxu0 0.0
    %616 = vmatprep.subr.mxu0 0.0
    %617 = vmatpush1.msra.mxu0 0.0
    %618 = vmatprep.subr.mxu0 0.0
    %619 = vmatpush1.msra.mxu0 0.0
    %620 = vmatprep.subr.mxu0 0.0
    %621 = vmatpush1.msra.mxu0 0.0
    %622 = vmatprep.subr.mxu0 0.0
    %623 = vmatpush1.msra.mxu0 0.0
    %624 = vmatprep.subr.mxu0 0.0
    %625 = vmatpush1.msra.mxu0 0.0
    %626 = vmatprep.subr.mxu0 0.0
    %627 = vmatpush1.msra.mxu0 0.0
    %628 = vmatprep.subr.mxu0 0.0
    %629 = vmatpush1.msra.mxu0 0.0
    %630 = vmatprep.subr.mxu0 0.0
    %631 = vmatpush1.msra.mxu0 0.0
    %632 = vmatprep.subr.mxu0 0.0
    %633 = vmatpush1.msra.mxu0 %v590
    %634 = vmatprep.subr.mxu0 0.0
    %635 = vmatpush2.msra.mxu0 0.0
    %636 = vmatprep.subr.mxu0 0.0
    %637 = vmatpush2.msra.mxu0 0.0
    %638 = vmatprep.subr.mxu0 0.0
    %639 = vmatpush2.msra.mxu0 0.0
    %640 = vmatprep.subr.mxu0 0.0
    %641 = vmatpush2.msra.mxu0 0.0
    %642 = vmatprep.subr.mxu0 0.0
    %643 = vmatpush2.msra.mxu0 0.0
    %644 = vmatprep.subr.mxu0 0.0
    %645 = vmatpush2.msra.mxu0 0.0
    %646 = vmatprep.subr.mxu0 0.0
    %647 = vmatpush2.msra.mxu0 0.0
    %648 = vmatprep.subr.mxu0 0.0
    %649 = vmatpush2.msra.mxu0 0.0
    %650 = vmatprep.subr.mxu0 0.0
    %651 = vmatpush2.msra.mxu0 0.0
    %652 = vmatprep.subr.mxu0 0.0
    %653 = vmatpush2.msra.mxu0 0.0
    %654 = vmatprep.subr.mxu0 0.0
    %655 = vmatpush2.msra.mxu0 0.0
    %656 = vmatprep.subr.mxu0 0.0
    %657 = vmatpush2.msra.mxu0 0.0
    %658 = vmatprep.subr.mxu0 0.0
    %659 = vmatpush2.msra.mxu0 0.0
    %660 = vmatprep.subr.mxu0 0.0
    %661 = vmatpush2.msra.mxu0 0.0
    %662 = vmatprep.subr.mxu0 0.0
    %663 = vmatpush2.msra.mxu0 0.0
    %664 = vmatprep.subr.mxu0 0.0
    %665 = vmatpush2.msra.mxu0 0.0
    %666 = vmatprep.mubr.f32.mxu0 0.0
    %667 = vmatmul.mubr.f32.gmra.mxu0 %v600
    %v668 = vpop.f32.mrf.mxu0
    %v669 = vadd.f32 %v597, %v668
    %v670 = vpop.f32.mrf.mxu0
    %671 = vdwg.mxu0
    %vm672 = vcmp.gt.f32.partialorder %v669, 0.0
    %v673 = vmul.f32 %v669, 0.01
    %v674 = vsel %vm672, %v669, %v673
    %s675 = scalar_lea.vmem %s3, 96
    %v676 = vld [vmem:[%s675] sm:$0xff]
    %v677 = vld [vmem:[%s675 + $0x8] sm:$0xff]
    %v678 = vld [vmem:[%s675 + $0x10] sm:$0xff]
    %v679 = vld [vmem:[%s675 + $0x18] sm:$0xff]
    %s680 = scalar_lea.vmem %s4, 3
    %v681 = vld [vmem:[%s680] sm:$0x1]
    %v683 = vlaneseq
    %v684 = vshrl.u32 %v683, 7
    %v685 = vsub.s32 0, %v684
    %v686 = vrot.slane %v681, %v685
    %v689 = vsel %vm130, %v674, 0
    %691 = vmatprep.subr.mxu0 0.0
    %692 = vmatpush1.msra.mxu0 0.0
    %693 = vmatprep.subr.mxu0 0.0
    %694 = vmatpush1.msra.mxu0 0.0
    %695 = vmatprep.subr.mxu0 0.0
    %696 = vmatpush1.msra.mxu0 0.0
    %697 = vmatprep.subr.mxu0 0.0
    %698 = vmatpush1.msra.mxu0 0.0
    %699 = vmatprep.subr.mxu0 0.0
    %700 = vmatpush1.msra.mxu0 0.0
    %701 = vmatprep.subr.mxu0 0.0
    %702 = vmatpush1.msra.mxu0 0.0
    %703 = vmatprep.subr.mxu0 0.0
    %704 = vmatpush1.msra.mxu0 0.0
    %705 = vmatprep.subr.mxu0 0.0
    %706 = vmatpush1.msra.mxu0 0.0
    %707 = vmatprep.subr.mxu0 0.0
    %708 = vmatpush1.msra.mxu0 0.0
    %709 = vmatprep.subr.mxu0 0.0
    %710 = vmatpush1.msra.mxu0 0.0
    %711 = vmatprep.subr.mxu0 0.0
    %712 = vmatpush1.msra.mxu0 0.0
    %713 = vmatprep.subr.mxu0 0.0
    %714 = vmatpush1.msra.mxu0 0.0
    %715 = vmatprep.subr.mxu0 0.0
    %716 = vmatpush1.msra.mxu0 %v679
    %717 = vmatprep.subr.mxu0 0.0
    %718 = vmatpush1.msra.mxu0 %v678
    %719 = vmatprep.subr.mxu0 0.0
    %720 = vmatpush1.msra.mxu0 %v677
    %721 = vmatprep.subr.mxu0 0.0
    %722 = vmatpush1.msra.mxu0 %v676
    %723 = vmatprep.subr.mxu0 0.0
    %724 = vmatpush2.msra.mxu0 0.0
    %725 = vmatprep.subr.mxu0 0.0
    %726 = vmatpush2.msra.mxu0 0.0
    %727 = vmatprep.subr.mxu0 0.0
    %728 = vmatpush2.msra.mxu0 0.0
    %729 = vmatprep.subr.mxu0 0.0
    %730 = vmatpush2.msra.mxu0 0.0
    %731 = vmatprep.subr.mxu0 0.0
    %732 = vmatpush2.msra.mxu0 0.0
    %733 = vmatprep.subr.mxu0 0.0
    %734 = vmatpush2.msra.mxu0 0.0
    %735 = vmatprep.subr.mxu0 0.0
    %736 = vmatpush2.msra.mxu0 0.0
    %737 = vmatprep.subr.mxu0 0.0
    %738 = vmatpush2.msra.mxu0 0.0
    %739 = vmatprep.subr.mxu0 0.0
    %740 = vmatpush2.msra.mxu0 0.0
    %741 = vmatprep.subr.mxu0 0.0
    %742 = vmatpush2.msra.mxu0 0.0
    %743 = vmatprep.subr.mxu0 0.0
    %744 = vmatpush2.msra.mxu0 0.0
    %745 = vmatprep.subr.mxu0 0.0
    %746 = vmatpush2.msra.mxu0 0.0
    %747 = vmatprep.subr.mxu0 0.0
    %748 = vmatpush2.msra.mxu0 0.0
    %749 = vmatprep.subr.mxu0 0.0
    %750 = vmatpush2.msra.mxu0 0.0
    %751 = vmatprep.subr.mxu0 0.0
    %752 = vmatpush2.msra.mxu0 0.0
    %753 = vmatprep.subr.mxu0 0.0
    %754 = vmatpush2.msra.mxu0 0.0
    %755 = vmatprep.mubr.f32.mxu0 0.0
    %756 = vmatmul.mubr.f32.gmra.mxu0 %v689
    %v757 = vpop.f32.mrf.mxu0
    %v758 = vadd.f32 %v686, %v757
    %v759 = vpop.f32.mrf.mxu0
    %760 = vdwg.mxu0
    %v761 = vmul.f32 %v758, 1.442695
    %v762 = vpow.pop %v761
    %v763 = vmul.f32 %v582, %v762
    %765 = vrot.lane.b32.xlu0 %v758, 120
    %v766 = vpop.permute.xlu0 %765
    %v768 = vadd.f32 %v763, %v766
    %s769 = scalar_lea.vmem [#allocation4], 24
    %770 = vst.msk [vmem:[%s769] sm:$0xff] %vm42, %v768
    %v771 = vsel %vm42, %v758, 0.0
    %772 = vadd.xlane.f32.xlu0 %v771
    %v773 = vpop.xlane.xlu0 %772
    %v774 = vadd.f32 %v588, %v773
    %775 = vst.msk [vmem:[#allocation2] sm:$0xff] %vm42, %v768
    %vm776 = vcmask 7168
    %777 = vst.msk [vmem:[#allocation3] sm:$0xff] %vm776, %v774
    // Predicated region
    $region26: #{tpu_custom_call.1} parent=1 // pred_check
      %p778 = pneg %p23
    $region27: #{tpu_custom_call.1} parent=1 // pred_check_branch
      %780 = sbr.rel (%p778) target = $region29
    $region28: #{tpu_custom_call.1} parent=1 // pred_region
      %781 = vst.msk [vmem:[%s6] sm:$0xff] %vm776, %v774
    $region29: #{tpu_custom_call.1} parent=1 // pred_fallthru
      _
    // Predicated region
    $region30: #{tpu_custom_call.1} parent=1 // pred_check
      _
    $region31: #{tpu_custom_call.1} parent=1 // pred_check_branch
      %783 = sbr.rel (0) target = $region33
    $region32: #{tpu_custom_call.1} parent=1 // pred_region
      %s785 = ssub.s32 512, 512
      %786 = vsyncadd [#allocation5], %s785
      %s787 = sshll.u32 [#allocation4], 4
      %s788 = int_to_ptr.vmem [resolvable:$true] %s787
      %793 = dma.vmem_to_hbm [thread:$0]  %s788, 512, %s5, [#allocation5], 128, 128, 8
    $region33: #{tpu_custom_call.1} parent=1 // pred_fallthru
      _
    // Predicated region
    $region34: #{tpu_custom_call.1} parent=1 // pred_check
      _
    $region35: #{tpu_custom_call.1} parent=1 // pred_check_branch
      %795 = sbr.rel (0) target = $region37
    $region36: #{tpu_custom_call.1} parent=1 // pred_region
      _
    $region37: #{tpu_custom_call.1} parent=1 // pred_fallthru
      _
    // Predicated region
    $region38: #{tpu_custom_call.1} parent=1 // pred_check
      _
    $region39: #{tpu_custom_call.1} parent=1 // pred_check_branch
      %797 = sbr.rel (0) target = $region41
    $region40: #{tpu_custom_call.1} parent=1 // pred_region
      %798 = dma.done [#allocation5], 512
    $region41: #{tpu_custom_call.1} parent=1 // pred_fallthru
      _
    // Predicated region
    $region42: #{tpu_custom_call.1} parent=1 // pred_check
      _
    $region43: #{tpu_custom_call.1} parent=1 // pred_check_branch
      %800 = sbr.rel (0) target = $region45
    $region44: #{tpu_custom_call.1} parent=1 // pred_region
      _
    $region45: #{tpu_custom_call.1} parent=1 // pred_fallthru
      _
    %801 = vsyncpa [#allocation5], 1

</llo_original>
